<compile_context>
chip_gen: v7x
topology: tpu7x:2x2x1
jax: 0.10.0
libtpu: 0.0.40
codegen_flags: <defaults>
</compile_context>

<pallas_src>
import jax
import jax.numpy as jnp
from jax.experimental import pallas as pl
from jax.experimental.pallas import tpu as pltpu


def _additive_attention_kernel(q_ref, k_ref, v_ref,
                               wq_ref, bq_ref, wk_ref, bk_ref, we_ref, be_ref,
                               ctx_ref, attn_ref):
    # q_ref:  (TB, Dq)      k_ref: (TB, S, Dk)   v_ref: (TB, S, Dv)
    # wq_ref: (Dq, H)       bq_ref: (1, H)       (weights pre-transposed)
    # wk_ref: (Dk, H)       bk_ref: (1, H)
    # we_ref: (1, H)        be_ref: (1,) scalar in SMEM
    # ctx_ref: (TB, Dv)     attn_ref: (TB, S)
    TB, S, Dk = k_ref.shape
    H = wq_ref.shape[1]
    Dv = v_ref.shape[2]

    q = q_ref[...]                                   # (TB, Dq)
    keys = k_ref[...]                                # (TB, S, Dk)
    values = v_ref[...]                              # (TB, S, Dv)

    # query_layer(query) -> (TB, H), f32 accumulation on the MXU.
    q_proj = jnp.dot(q, wq_ref[...],
                     preferred_element_type=jnp.float32) + bq_ref[...]

    # key_layer(keys): flatten batch*seq into the matmul rows -> (TB*S, H).
    k_proj = jnp.dot(keys.reshape(TB * S, Dk), wk_ref[...],
                     preferred_element_type=jnp.float32) + bk_ref[...]
    k_proj = k_proj.reshape(TB, S, H)

    # energy = tanh(query.unsqueeze(1) + keys) -> (TB, S, H), f32.
    energy = jnp.tanh(k_proj + q_proj[:, None, :])

    # energy_layer(energy).squeeze(-1): lane-aligned contraction over H
    # (no activation transpose), plus the scalar bias from SMEM.
    scores = jnp.sum(energy * we_ref[...][None, :, :], axis=-1) + be_ref[0]

    # softmax over the sequence axis (f32 max/exp/sum; EUP approx reciprocal).
    m = jnp.max(scores, axis=-1, keepdims=True)
    e = jnp.exp(scores - m)
    denom = jnp.sum(e, axis=-1, keepdims=True)
    w = e * pl.reciprocal(denom, approx=True)        # (TB, S)

    # context = bmm(weights.unsqueeze(1), values).squeeze(1) -> (TB, Dv).
    ctx = jnp.einsum('tqs,tsd->tqd',
                     w.astype(values.dtype).reshape(TB, 1, S), values,
                     preferred_element_type=jnp.float32)

    ctx_ref[...] = ctx.reshape(TB, Dv).astype(ctx_ref.dtype)
    attn_ref[...] = w.astype(attn_ref.dtype)


def _pick_batch_tile(B, S, Dk, Dv, itemsize, vmem_budget_bytes=8 * 1024 * 1024):
    """Largest batch tile (multiple of 8, capped at 512, or the whole batch)
    whose double-buffered keys+values streams fit a conservative VMEM budget
    (also safe for v7x's smaller physical VMEM)."""
    bytes_per_row = 2 * S * (Dk + Dv) * max(int(itemsize), 1)   # 2x: dbl buffer
    cap = vmem_budget_bytes // max(bytes_per_row, 1)
    cap = max(8, min(512, (cap // 8) * 8))
    return B if B <= cap else cap


def additive_attention(query, keys, values, params, *,
                       block_b=None, compute_dtype=jnp.bfloat16):
    """query: (B, Dq), keys: (B, S, Dk), values: (B, S, Dv).

    params = (wq, bq, wk, bk, we, be) in nn.Linear layout:
      wq (H, Dq), bq (H,), wk (H, Dk), bk (H,), we (1, H), be (1,).
    Returns (context (B, Dv), attention_weights (B, S)) in query.dtype.
    """
    wq, bq, wk, bk, we, be = params
    B, Dq = query.shape
    _, S, Dk = keys.shape
    Dv = values.shape[-1]
    H = wq.shape[0]
    out_dtype = query.dtype
    cd = jnp.dtype(compute_dtype) if compute_dtype is not None else jnp.dtype(query.dtype)

    # --- batch tile selection (and padding to a whole number of tiles) ------
    if block_b is None:
        block_b = _pick_batch_tile(B, S, Dk, Dv, cd.itemsize)
    block_b = max(1, min(int(block_b), B))
    if block_b < B:
        block_b = max(8, (block_b // 8) * 8)          # (8,128) tiling rule
    num_tiles = pl.cdiv(B, block_b)
    Bp = num_tiles * block_b
    if Bp != B:
        pad = Bp - B
        query = jnp.pad(query, ((0, pad), (0, 0)))
        keys = jnp.pad(keys, ((0, pad), (0, 0), (0, 0)))
        values = jnp.pad(values, ((0, pad), (0, 0), (0, 0)))

    # --- wrapper-side layout prep: cast + one-time weight transpose ---------
    q_c = query.astype(cd)
    k_c = keys.astype(cd)
    v_c = values.astype(cd)
    wq_t = wq.T.astype(cd)                            # (Dq, H)
    wk_t = wk.T.astype(cd)                            # (Dk, H)
    bq2 = bq.reshape(1, H).astype(jnp.float32)
    bk2 = bk.reshape(1, H).astype(jnp.float32)
    we2 = we.reshape(1, H).astype(jnp.float32)
    be1 = be.reshape(1).astype(jnp.float32)

    grid_spec = pltpu.PrefetchScalarGridSpec(
        num_scalar_prefetch=0,
        grid=(num_tiles,),
        in_specs=[
            pl.BlockSpec((block_b, Dq), lambda b: (b, 0)),           # query
            pl.BlockSpec((block_b, S, Dk), lambda b: (b, 0, 0)),     # keys
            pl.BlockSpec((block_b, S, Dv), lambda b: (b, 0, 0)),     # values
            pl.BlockSpec((Dq, H), lambda b: (0, 0)),                 # Wq^T
            pl.BlockSpec((1, H), lambda b: (0, 0)),                  # bq
            pl.BlockSpec((Dk, H), lambda b: (0, 0)),                 # Wk^T
            pl.BlockSpec((1, H), lambda b: (0, 0)),                  # bk
            pl.BlockSpec((1, H), lambda b: (0, 0)),                  # We
            pl.BlockSpec(memory_space=pltpu.MemorySpace.SMEM),       # be scalar
        ],
        out_specs=[
            pl.BlockSpec((block_b, Dv), lambda b: (b, 0)),           # context
            pl.BlockSpec((block_b, S), lambda b: (b, 0)),            # attention
        ],
    )

    ctx, attn = pl.pallas_call(
        _additive_attention_kernel,
        out_shape=(
            jax.ShapeDtypeStruct((Bp, Dv), out_dtype),
            jax.ShapeDtypeStruct((Bp, S), out_dtype),
        ),
        grid_spec=grid_spec,
        compiler_params=pltpu.CompilerParams(
            dimension_semantics=("parallel",)),
    )(q_c, k_c, v_c, wq_t, bq2, wk_t, bk2, we2, be1)

    if Bp != B:
        ctx = ctx[:B]
        attn = attn[:B]
    return ctx, attn


def _reference(query, keys, values, params):
    wq, bq, wk, bk, we, be = params
    q_proj = (query @ wq.T + bq)[:, None, :]             # (B,1,H)
    k_proj = keys @ wk.T + bk                            # (B,S,H)
    energy = jnp.tanh(q_proj + k_proj)                   # (B,S,H)
    scores = (energy @ we.T + be)[..., 0]                # (B,S)
    weights = jax.nn.softmax(scores, axis=-1)            # (B,S)
    context = jnp.einsum('bs,bsd->bd', weights, values)  # (B,Dv)
    return context, weights


if __name__ == "__main__":
    B, S = 2, 8
    query_dim, key_dim, value_dim, hidden_dim = 16, 24, 32, 32

    key = jax.random.PRNGKey(0)
    k1, k2, k3, k4, k5, k6, k7, k8, k9 = jax.random.split(key, 9)

    # nn.Linear layouts: weight (out, in), bias (out,).
    wq = jax.random.normal(k1, (hidden_dim, query_dim), jnp.float32) * 0.1
    bq = jax.random.normal(k2, (hidden_dim,), jnp.float32) * 0.1
    wk = jax.random.normal(k3, (hidden_dim, key_dim), jnp.float32) * 0.1
    bk = jax.random.normal(k4, (hidden_dim,), jnp.float32) * 0.1
    we = jax.random.normal(k5, (1, hidden_dim), jnp.float32) * 0.1
    be = jax.random.normal(k6, (1,), jnp.float32) * 0.1
    params = (wq, bq, wk, bk, we, be)

    query = jax.random.normal(k7, (B, query_dim), jnp.float32)
    keys = jax.random.normal(k8, (B, S, key_dim), jnp.float32)
    values = jax.random.normal(k9, (B, S, value_dim), jnp.float32)

    ctx_ref, attn_ref = _reference(query, keys, values, params)

    # float32 matmul path: only deltas vs. the reference are the EUP exp and
    # the approximate reciprocal used in the softmax normalisation.
    ctx32, attn32 = additive_attention(query, keys, values, params,
                                       compute_dtype=jnp.float32)
    jax.block_until_ready((ctx32, attn32))
    assert jnp.allclose(ctx32, ctx_ref, atol=1e-2, rtol=1e-2)
    assert jnp.allclose(attn32, attn_ref, atol=1e-2, rtol=1e-2)

    # default path: bf16 matmul inputs, f32 accumulation / tanh / softmax.
    # Looser tolerance accounts for bf16 rounding of inputs and weights.
    ctx16, attn16 = additive_attention(query, keys, values, params)
    jax.block_until_ready((ctx16, attn16))
    assert jnp.allclose(ctx16, ctx_ref, atol=5e-2, rtol=5e-2)
    assert jnp.allclose(attn16, attn_ref, atol=5e-2, rtol=5e-2)
    assert jnp.allclose(jnp.sum(attn16, axis=-1), 1.0, atol=5e-3)

    print("KERNEL_OK")
</pallas_src>

<mosaic_0001>
module attributes {stable_mosaic.version = 11 : i64} {
  func.func @_additive_attention_kernel(%arg0: i32, %arg1: memref<2x16xf32, #tpu.memory_space<vmem>>, %arg2: memref<2x8x24xf32, #tpu.memory_space<vmem>>, %arg3: memref<2x8x32xf32, #tpu.memory_space<vmem>>, %arg4: memref<16x32xf32, #tpu.memory_space<vmem>>, %arg5: memref<1x32xf32, #tpu.memory_space<vmem>>, %arg6: memref<24x32xf32, #tpu.memory_space<vmem>>, %arg7: memref<1x32xf32, #tpu.memory_space<vmem>>, %arg8: memref<1x32xf32, #tpu.memory_space<vmem>>, %arg9: memref<1xf32, #tpu.memory_space<smem>>, %arg10: memref<2x32xf32, #tpu.memory_space<vmem>>, %arg11: memref<2x8xf32, #tpu.memory_space<vmem>>) attributes {dimension_semantics = [#tpu.dimension_semantics<parallel>], iteration_bounds = array<i64: 1>, scalar_prefetch = 0 : i64, scratch_operands = 0 : i64, tpu.core_type = #tpu.core_type<tc>, window_params = [{transform_indices = @transform_0, window_bounds = array<i64: 2, 16>}, {transform_indices = @transform_1, window_bounds = array<i64: 2, 8, 24>}, {transform_indices = @transform_2, window_bounds = array<i64: 2, 8, 32>}, {pipeline_mode = #tpu.pipeline_mode<synchronous>, transform_indices = @transform_3, window_bounds = array<i64: 16, 32>}, {pipeline_mode = #tpu.pipeline_mode<synchronous>, transform_indices = @transform_4, window_bounds = array<i64: 1, 32>}, {pipeline_mode = #tpu.pipeline_mode<synchronous>, transform_indices = @transform_5, window_bounds = array<i64: 24, 32>}, {pipeline_mode = #tpu.pipeline_mode<synchronous>, transform_indices = @transform_6, window_bounds = array<i64: 1, 32>}, {pipeline_mode = #tpu.pipeline_mode<synchronous>, transform_indices = @transform_7, window_bounds = array<i64: 1, 32>}, {transform_indices = @transform_8, window_bounds = array<i64: 1>}, {transform_indices = @transform_9, window_bounds = array<i64: 2, 32>}, {transform_indices = @transform_10, window_bounds = array<i64: 2, 8>}]} {
    %c0 = arith.constant 0 : index
    %c0_0 = arith.constant 0 : index
    %0 = vector.load %arg1[%c0, %c0_0] : memref<2x16xf32, #tpu.memory_space<vmem>>, vector<2x16xf32>
    %c0_1 = arith.constant 0 : index
    %c0_2 = arith.constant 0 : index
    %c0_3 = arith.constant 0 : index
    %1 = vector.load %arg2[%c0_1, %c0_2, %c0_3] : memref<2x8x24xf32, #tpu.memory_space<vmem>>, vector<2x8x24xf32>
    %c0_4 = arith.constant 0 : index
    %c0_5 = arith.constant 0 : index
    %c0_6 = arith.constant 0 : index
    %2 = vector.load %arg3[%c0_4, %c0_5, %c0_6] : memref<2x8x32xf32, #tpu.memory_space<vmem>>, vector<2x8x32xf32>
    %c0_7 = arith.constant 0 : index
    %c0_8 = arith.constant 0 : index
    %3 = vector.load %arg4[%c0_7, %c0_8] : memref<16x32xf32, #tpu.memory_space<vmem>>, vector<16x32xf32>
    %cst = arith.constant dense<0.000000e+00> : vector<2x32xf32>
    %4 = tpu.matmul %0, %3, %cst {dimension_numbers = #tpu.dot_dimension_numbers<[1], [0], [0], [1], [0, 0, 1, 1], [], []>} : vector<2x16xf32>, vector<16x32xf32>, vector<2x32xf32> -> vector<2x32xf32>
    %c0_9 = arith.constant 0 : index
    %c0_10 = arith.constant 0 : index
    %5 = vector.load %arg5[%c0_9, %c0_10] : memref<1x32xf32, #tpu.memory_space<vmem>>, vector<1x32xf32>
    %6 = vector.broadcast %5 : vector<1x32xf32> to vector<2x32xf32>
    %7 = arith.addf %4, %6 : vector<2x32xf32>
    %8 = vector.shape_cast %1 : vector<2x8x24xf32> to vector<16x24xf32>
    %c0_11 = arith.constant 0 : index
    %c0_12 = arith.constant 0 : index
    %9 = vector.load %arg6[%c0_11, %c0_12] : memref<24x32xf32, #tpu.memory_space<vmem>>, vector<24x32xf32>
    %cst_13 = arith.constant dense<0.000000e+00> : vector<16x32xf32>
    %10 = tpu.matmul %8, %9, %cst_13 {dimension_numbers = #tpu.dot_dimension_numbers<[1], [0], [0], [1], [0, 0, 1, 1], [], []>} : vector<16x24xf32>, vector<24x32xf32>, vector<16x32xf32> -> vector<16x32xf32>
    %c0_14 = arith.constant 0 : index
    %c0_15 = arith.constant 0 : index
    %11 = vector.load %arg7[%c0_14, %c0_15] : memref<1x32xf32, #tpu.memory_space<vmem>>, vector<1x32xf32>
    %12 = vector.broadcast %11 : vector<1x32xf32> to vector<16x32xf32>
    %13 = arith.addf %10, %12 : vector<16x32xf32>
    %14 = vector.shape_cast %13 : vector<16x32xf32> to vector<2x8x32xf32>
    %15 = vector.shape_cast %7 : vector<2x32xf32> to vector<2x1x32xf32>
    %16 = vector.broadcast %15 : vector<2x1x32xf32> to vector<2x8x32xf32>
    %17 = arith.addf %14, %16 : vector<2x8x32xf32>
    %18 = math.tanh %17 : vector<2x8x32xf32>
    %c0_16 = arith.constant 0 : index
    %c0_17 = arith.constant 0 : index
    %19 = vector.load %arg8[%c0_16, %c0_17] : memref<1x32xf32, #tpu.memory_space<vmem>>, vector<1x32xf32>
    %20 = vector.shape_cast %19 : vector<1x32xf32> to vector<1x1x32xf32>
    %21 = vector.broadcast %20 : vector<1x1x32xf32> to vector<2x8x32xf32>
    %22 = arith.mulf %18, %21 : vector<2x8x32xf32>
    %cst_18 = arith.constant dense<0.000000e+00> : vector<2x8xf32>
    %23 = vector.multi_reduction <add>, %22, %cst_18 [2] : vector<2x8x32xf32> to vector<2x8xf32>
    %c0_19 = arith.constant 0 : index
    %24 = memref.load %arg9[%c0_19] : memref<1xf32, #tpu.memory_space<smem>>
    %25 = vector.broadcast %24 : f32 to vector<2x8xf32>
    %26 = arith.addf %23, %25 : vector<2x8xf32>
    %cst_20 = arith.constant dense<0xFF800000> : vector<2xf32>
    %27 = vector.multi_reduction <maximumf>, %26, %cst_20 [1] : vector<2x8xf32> to vector<2xf32>
    %28 = vector.shape_cast %27 : vector<2xf32> to vector<2x1xf32>
    %29 = vector.broadcast %28 : vector<2x1xf32> to vector<2x8xf32>
    %30 = arith.subf %26, %29 : vector<2x8xf32>
    %31 = math.exp %30 : vector<2x8xf32>
    %cst_21 = arith.constant dense<0.000000e+00> : vector<2xf32>
    %32 = vector.multi_reduction <add>, %31, %cst_21 [1] : vector<2x8xf32> to vector<2xf32>
    %33 = vector.shape_cast %32 : vector<2xf32> to vector<2x1xf32>
    %34 = tpu.reciprocal %33 {approx = true} : vector<2x1xf32> -> vector<2x1xf32>
    %35 = vector.broadcast %34 : vector<2x1xf32> to vector<2x8xf32>
    %36 = arith.mulf %31, %35 : vector<2x8xf32>
    %37 = vector.shape_cast %36 : vector<2x8xf32> to vector<2x1x8xf32>
    "tpu.trace_start"() <{level = 10 : i32, message = "tqs,tsd->tqd"}> : () -> ()
    %cst_22 = arith.constant dense<0.000000e+00> : vector<2x1x32xf32>
    %38 = tpu.matmul %37, %2, %cst_22 {dimension_numbers = #tpu.dot_dimension_numbers<[2], [1], [1], [2], [0, 0, 0, 1, 1, 2], [0], [0]>} : vector<2x1x8xf32>, vector<2x8x32xf32>, vector<2x1x32xf32> -> vector<2x1x32xf32>
    "tpu.trace_stop"() : () -> ()
    %39 = vector.shape_cast %38 : vector<2x1x32xf32> to vector<2x32xf32>
    %c0_23 = arith.constant 0 : index
    %c0_24 = arith.constant 0 : index
    %40 = vector.load %arg10[%c0_23, %c0_24] : memref<2x32xf32, #tpu.memory_space<vmem>>, vector<2x32xf32>
    tpu.vector_store %arg10[%c0_23, %c0_24], %39 {strides = array<i32>} : memref<2x32xf32, #tpu.memory_space<vmem>>, vector<2x32xf32>,
    %c0_25 = arith.constant 0 : index
    %c0_26 = arith.constant 0 : index
    %41 = vector.load %arg11[%c0_25, %c0_26] : memref<2x8xf32, #tpu.memory_space<vmem>>, vector<2x8xf32>
    tpu.vector_store %arg11[%c0_25, %c0_26], %36 {strides = array<i32>} : memref<2x8xf32, #tpu.memory_space<vmem>>, vector<2x8xf32>,
    return
  }
  func.func @transform_0(%arg0: i32) -> (i32, i32) {
    %c0_i32 = arith.constant 0 : i32
    %c0_i32_0 = arith.constant 0 : i32
    return %arg0, %c0_i32 : i32, i32
  }
  func.func @transform_1(%arg0: i32) -> (i32, i32, i32) {
    %c0_i32 = arith.constant 0 : i32
    %c0_i32_0 = arith.constant 0 : i32
    %c0_i32_1 = arith.constant 0 : i32
    return %arg0, %c0_i32, %c0_i32_0 : i32, i32, i32
  }
  func.func @transform_2(%arg0: i32) -> (i32, i32, i32) {
    %c0_i32 = arith.constant 0 : i32
    %c0_i32_0 = arith.constant 0 : i32
    %c0_i32_1 = arith.constant 0 : i32
    return %arg0, %c0_i32, %c0_i32_0 : i32, i32, i32
  }
  func.func @transform_3(%arg0: i32) -> (i32, i32) {
    %c0_i32 = arith.constant 0 : i32
    %c0_i32_0 = arith.constant 0 : i32
    %c0_i32_1 = arith.constant 0 : i32
    return %c0_i32, %c0_i32_0 : i32, i32
  }
  func.func @transform_4(%arg0: i32) -> (i32, i32) {
    %c0_i32 = arith.constant 0 : i32
    %c0_i32_0 = arith.constant 0 : i32
    %c0_i32_1 = arith.constant 0 : i32
    return %c0_i32, %c0_i32_0 : i32, i32
  }
  func.func @transform_5(%arg0: i32) -> (i32, i32) {
    %c0_i32 = arith.constant 0 : i32
    %c0_i32_0 = arith.constant 0 : i32
    %c0_i32_1 = arith.constant 0 : i32
    return %c0_i32, %c0_i32_0 : i32, i32
  }
  func.func @transform_6(%arg0: i32) -> (i32, i32) {
    %c0_i32 = arith.constant 0 : i32
    %c0_i32_0 = arith.constant 0 : i32
    %c0_i32_1 = arith.constant 0 : i32
    return %c0_i32, %c0_i32_0 : i32, i32
  }
  func.func @transform_7(%arg0: i32) -> (i32, i32) {
    %c0_i32 = arith.constant 0 : i32
    %c0_i32_0 = arith.constant 0 : i32
    %c0_i32_1 = arith.constant 0 : i32
    return %c0_i32, %c0_i32_0 : i32, i32
  }
  func.func @transform_8(%arg0: i32) -> i32 {
    %c0_i32 = arith.constant 0 : i32
    %c0_i32_0 = arith.constant 0 : i32
    return %c0_i32 : i32
  }
  func.func @transform_9(%arg0: i32) -> (i32, i32) {
    %c0_i32 = arith.constant 0 : i32
    %c0_i32_0 = arith.constant 0 : i32
    return %arg0, %c0_i32 : i32, i32
  }
  func.func @transform_10(%arg0: i32) -> (i32, i32) {
    %c0_i32 = arith.constant 0 : i32
    %c0_i32_0 = arith.constant 0 : i32
    return %arg0, %c0_i32 : i32, i32
  }
}

</mosaic_0001>

<llo_original>
// kernel: tpu_custom_call.1
$region0: #{tpu_custom_call.1}
  #allocation0 [shape = 'u32[]', space=smem, size = 0x4, offset = 0x4, fixed_abs, tag = 'smem constant byte address 0x4 - core index']
  #allocation1 [shape = 'u32[144,128]{1,0:T(1,128)}', space=vmem, size = 0x12000, scoped, tag = 'internal scratch']
  #allocation2 [shape = 'f32[1]{0:T(128)S(6)}', space=smem, size = 0x200, scoped, tag = 'scoped memory for tpu_custom_call.1']
  %s0 = inlined_call_operand.vmem [shape: f32[2,16], index: 0, kind: input, shape index: {}]
  %s1 = inlined_call_operand.hbm [shape: f32[2,8,24], index: 1, kind: input, shape index: {}]
  %s2 = inlined_call_operand.hbm [shape: f32[2,8,32], index: 2, kind: input, shape index: {}]
  %s3 = inlined_call_operand.hbm [shape: f32[16,32], index: 3, kind: input, shape index: {}]
  %s4 = inlined_call_operand.vmem [shape: f32[1,32], index: 4, kind: input, shape index: {}]
  %s5 = inlined_call_operand.hbm [shape: f32[24,32], index: 5, kind: input, shape index: {}]
  %s6 = inlined_call_operand.vmem [shape: f32[1,32], index: 6, kind: input, shape index: {}]
  %s7 = inlined_call_operand.vmem [shape: f32[1,32], index: 7, kind: input, shape index: {}]
  %s8 = inlined_call_operand.<no memory space> [shape: f32[1], index: 8, kind: input, shape index: {}]
  %s9 = inlined_call_operand.hbm [shape: f32[2,32], index: 9, kind: output, shape index: {0}]
  %s10 = inlined_call_operand.hbm [shape: f32[2,8], index: 10, kind: output, shape index: {1}]
  %11 = xla_tuple %s9, %s10
  %s12 = sld [smem:[#allocation0]]
  $region70: #{tpu_custom_call.1} parent=0
    _
  %s14 = ssub.s32 1, %s12
  %s15 = scalar_select 0, %s14, %s12
  %16 = sst [smem:[#allocation2]] %s8
  $region1: #{tpu_custom_call.1} parent=0
    #allocation3 [shape = 'u8[8192]{0}', space=vmem, size = 0x2000, scoped, tag = 'input window, operand 1, single buffered']
    #allocation4 [shape = 's32[1]{0}', space=sflag, size = 0x4, scoped, tag = 'scoped memory for tpu_custom_call.1']
    #allocation5 [shape = 's32[1]{0}', space=sflag, size = 0x4, scoped, tag = 'scoped memory for tpu_custom_call.1']
    #allocation6 [shape = 'u8[8192]{0}', space=vmem, size = 0x2000, scoped, tag = 'input window, operand 2, single buffered']
    #allocation7 [shape = 's32[1]{0}', space=sflag, size = 0x4, scoped, tag = 'scoped memory for tpu_custom_call.1']
    #allocation8 [shape = 'u8[8192]{0}', space=vmem, size = 0x2000, scoped, tag = 'input window, operand 3, single buffered']
    #allocation9 [shape = 'u8[12288]{0}', space=vmem, size = 0x3000, scoped, tag = 'input window, operand 5, single buffered']
    #allocation10 [shape = 's32[1]{0}', space=sflag, size = 0x4, scoped, tag = 'scoped memory for tpu_custom_call.1']
    #allocation11 [shape = 'u8[1024]{0}', space=vmem, size = 0x400, scoped, tag = 'output window, operand 0, single buffered']
    #allocation12 [shape = 'u8[1024]{0}', space=vmem, size = 0x400, scoped, tag = 'output window, operand 1, single buffered']
    #allocation13 [shape = 's32[1]{0}', space=sflag, size = 0x4, scoped, tag = 'scoped memory for tpu_custom_call.1']
    %17 = vsyncpa [#allocation4], 0
    %18 = vsyncpa [#allocation7], 0
    %19 = vsyncpa [#allocation10], 0
    %20 = vsyncpa [#allocation5], 0
    %21 = vsyncpa [#allocation13], 0
    // Predicated region
    $region2: #{tpu_custom_call.1} parent=1 // pred_check
      _
    $region3: #{tpu_custom_call.1} parent=1 // pred_check_branch
      %23 = sbr.rel (0) target = $region5
    $region4: #{tpu_custom_call.1} parent=1 // pred_region
      _
    $region5: #{tpu_custom_call.1} parent=1 // pred_fallthru
      _
    // Predicated region
    $region6: #{tpu_custom_call.1} parent=1 // pred_check
      _
    $region7: #{tpu_custom_call.1} parent=1 // pred_check_branch
      %25 = sbr.rel (0) target = $region9
    $region8: #{tpu_custom_call.1} parent=1 // pred_region
      %s27 = ssub.s32 256, 256
      %28 = vsyncadd [#allocation4], %s27
      %s29 = sshll.u32 [#allocation3], 4
      %s30 = int_to_ptr.vmem [resolvable:$true] %s29
      %35 = dma.hbm_to_vmem [thread:$0]  %s1, 256, %s30, [#allocation4], 128, 128, 8
    $region9: #{tpu_custom_call.1} parent=1 // pred_fallthru
      _
    // Predicated region
    $region10: #{tpu_custom_call.1} parent=1 // pred_check
      _
    $region11: #{tpu_custom_call.1} parent=1 // pred_check_branch
      %37 = sbr.rel (0) target = $region13
    $region12: #{tpu_custom_call.1} parent=1 // pred_region
      %s39 = ssub.s32 256, 256
      %40 = vsyncadd [#allocation7], %s39
      %s41 = sshll.u32 [#allocation6], 4
      %s42 = int_to_ptr.vmem [resolvable:$true] %s41
      %47 = dma.hbm_to_vmem [thread:$0]  %s2, 256, %s42, [#allocation7], 128, 128, 8
    $region13: #{tpu_custom_call.1} parent=1 // pred_fallthru
      _
    // Predicated region
    $region14: #{tpu_custom_call.1} parent=1 // pred_check
      _
    $region15: #{tpu_custom_call.1} parent=1 // pred_check_branch
      %49 = sbr.rel (0) target = $region17
    $region16: #{tpu_custom_call.1} parent=1 // pred_region
      %s51 = ssub.s32 256, 256
      %52 = vsyncadd [#allocation7], %s51
      %s53 = sshll.u32 [#allocation8], 4
      %s54 = int_to_ptr.vmem [resolvable:$true] %s53
      %59 = dma.hbm_to_vmem [thread:$0]  %s3, 256, %s54, [#allocation7], 128, 128, 8
    $region17: #{tpu_custom_call.1} parent=1 // pred_fallthru
      _
    // Predicated region
    $region18: #{tpu_custom_call.1} parent=1 // pred_check
      _
    $region19: #{tpu_custom_call.1} parent=1 // pred_check_branch
      %61 = sbr.rel (0) target = $region21
    $region20: #{tpu_custom_call.1} parent=1 // pred_region
      _
    $region21: #{tpu_custom_call.1} parent=1 // pred_fallthru
      _
    // Predicated region
    $region22: #{tpu_custom_call.1} parent=1 // pred_check
      _
    $region23: #{tpu_custom_call.1} parent=1 // pred_check_branch
      %63 = sbr.rel (0) target = $region25
    $region24: #{tpu_custom_call.1} parent=1 // pred_region
      %s65 = ssub.s32 384, 384
      %66 = vsyncadd [#allocation10], %s65
      %s67 = sshll.u32 [#allocation9], 4
      %s68 = int_to_ptr.vmem [resolvable:$true] %s67
      %73 = dma.hbm_to_vmem [thread:$0]  %s5, 384, %s68, [#allocation10], 128, 128, 8
    $region25: #{tpu_custom_call.1} parent=1 // pred_fallthru
      _
    // Predicated region
    $region26: #{tpu_custom_call.1} parent=1 // pred_check
      _
    $region27: #{tpu_custom_call.1} parent=1 // pred_check_branch
      %75 = sbr.rel (0) target = $region29
    $region28: #{tpu_custom_call.1} parent=1 // pred_region
      _
    $region29: #{tpu_custom_call.1} parent=1 // pred_fallthru
      _
    // Predicated region
    $region30: #{tpu_custom_call.1} parent=1 // pred_check
      _
    $region31: #{tpu_custom_call.1} parent=1 // pred_check_branch
      %77 = sbr.rel (0) target = $region33
    $region32: #{tpu_custom_call.1} parent=1 // pred_region
      _
    $region33: #{tpu_custom_call.1} parent=1 // pred_fallthru
      _
    // Predicated region
    $region34: #{tpu_custom_call.1} parent=1 // pred_check
      _
    $region35: #{tpu_custom_call.1} parent=1 // pred_check_branch
      %79 = sbr.rel (0) target = $region37
    $region36: #{tpu_custom_call.1} parent=1 // pred_region
      _
    $region37: #{tpu_custom_call.1} parent=1 // pred_fallthru
      _
    // Predicated region
    $region38: #{tpu_custom_call.1} parent=1 // pred_check
      _
    $region39: #{tpu_custom_call.1} parent=1 // pred_check_branch
      %81 = sbr.rel (0) target = $region41
    $region40: #{tpu_custom_call.1} parent=1 // pred_region
      %82 = dma.done [#allocation4], 256
    $region41: #{tpu_custom_call.1} parent=1 // pred_fallthru
      _
    // Predicated region
    $region42: #{tpu_custom_call.1} parent=1 // pred_check
      _
    $region43: #{tpu_custom_call.1} parent=1 // pred_check_branch
      %84 = sbr.rel (0) target = $region45
    $region44: #{tpu_custom_call.1} parent=1 // pred_region
      %85 = dma.done [#allocation7], 256
    $region45: #{tpu_custom_call.1} parent=1 // pred_fallthru
      _
    // Predicated region
    $region46: #{tpu_custom_call.1} parent=1 // pred_check
      _
    $region47: #{tpu_custom_call.1} parent=1 // pred_check_branch
      %87 = sbr.rel (0) target = $region49
    $region48: #{tpu_custom_call.1} parent=1 // pred_region
      %88 = dma.done [#allocation7], 256
    $region49: #{tpu_custom_call.1} parent=1 // pred_fallthru
      _
    // Predicated region
    $region50: #{tpu_custom_call.1} parent=1 // pred_check
      _
    $region51: #{tpu_custom_call.1} parent=1 // pred_check_branch
      %90 = sbr.rel (0) target = $region53
    $region52: #{tpu_custom_call.1} parent=1 // pred_region
      %91 = dma.done [#allocation10], 384
    $region53: #{tpu_custom_call.1} parent=1 // pred_fallthru
      _
    %v92 = vld [vmem:[%s0] sm:$0x3]
    %v93 = vld [vmem:[#allocation3] sm:$0xff]
    %v94 = vld [vmem:[#allocation3 + $0x8] sm:$0xff]
    %v95 = vld [vmem:[#allocation6] sm:$0xff]
    %v96 = vld [vmem:[#allocation6 + $0x8] sm:$0xff]
    %v97 = vld [vmem:[#allocation8] sm:$0xff]
    %v98 = vld [vmem:[#allocation8 + $0x8] sm:$0xff]
    %v99 = vld [vmem:[%s4] sm:$0x1]
    %v101 = vlaneseq
    %v102 = vshrl.u32 %v101, 7
    %v103 = vsub.s32 0, %v102
    %v104 = vrot.slane %v99, %v103
    %vm106 = vcmask 130048
    %v108 = vsel %vm106, %v92, 0
    %110 = vmatprep.subr.mxu0 0.0
    %111 = vmatpush1.msra.mxu0 %v97
    %112 = vmatprep.subr.mxu0 0.0
    %113 = vmatpush1.msra.mxu0 %v98
    %114 = vmatprep.subr.mxu0 0.0
    %115 = vmatpush1.msra.mxu0 0.0
    %116 = vmatprep.subr.mxu0 0.0
    %117 = vmatpush1.msra.mxu0 0.0
    %118 = vmatprep.subr.mxu0 0.0
    %119 = vmatpush1.msra.mxu0 0.0
    %120 = vmatprep.subr.mxu0 0.0
    %121 = vmatpush1.msra.mxu0 0.0
    %122 = vmatprep.subr.mxu0 0.0
    %123 = vmatpush1.msra.mxu0 0.0
    %124 = vmatprep.subr.mxu0 0.0
    %125 = vmatpush1.msra.mxu0 0.0
    %126 = vmatprep.subr.mxu0 0.0
    %127 = vmatpush1.msra.mxu0 0.0
    %128 = vmatprep.subr.mxu0 0.0
    %129 = vmatpush1.msra.mxu0 0.0
    %130 = vmatprep.subr.mxu0 0.0
    %131 = vmatpush1.msra.mxu0 0.0
    %132 = vmatprep.subr.mxu0 0.0
    %133 = vmatpush1.msra.mxu0 0.0
    %134 = vmatprep.subr.mxu0 0.0
    %135 = vmatpush1.msra.mxu0 0.0
    %136 = vmatprep.subr.mxu0 0.0
    %137 = vmatpush1.msra.mxu0 0.0
    %138 = vmatprep.subr.mxu0 0.0
    %139 = vmatpush1.msra.mxu0 0.0
    %140 = vmatprep.subr.mxu0 0.0
    %141 = vmatpush1.msra.mxu0 0.0
    %142 = vmatprep.subr.mxu0 0.0
    %143 = vmatpush1.msra.mxu0 0.0
    %144 = vmatprep.subr.mxu0 0.0
    %145 = vmatpush1.msra.mxu0 0.0
    %146 = vmatprep.subr.mxu0 0.0
    %147 = vmatpush1.msra.mxu0 0.0
    %148 = vmatprep.subr.mxu0 0.0
    %149 = vmatpush1.msra.mxu0 0.0
    %150 = vmatprep.subr.mxu0 0.0
    %151 = vmatpush1.msra.mxu0 0.0
    %152 = vmatprep.subr.mxu0 0.0
    %153 = vmatpush1.msra.mxu0 0.0
    %154 = vmatprep.subr.mxu0 0.0
    %155 = vmatpush1.msra.mxu0 0.0
    %156 = vmatprep.subr.mxu0 0.0
    %157 = vmatpush1.msra.mxu0 0.0
    %158 = vmatprep.subr.mxu0 0.0
    %159 = vmatpush1.msra.mxu0 0.0
    %160 = vmatprep.subr.mxu0 0.0
    %161 = vmatpush1.msra.mxu0 0.0
    %162 = vmatprep.subr.mxu0 0.0
    %163 = vmatpush1.msra.mxu0 0.0
    %164 = vmatprep.subr.mxu0 0.0
    %165 = vmatpush1.msra.mxu0 0.0
    %166 = vmatprep.subr.mxu0 0.0
    %167 = vmatpush1.msra.mxu0 0.0
    %168 = vmatprep.subr.mxu0 0.0
    %169 = vmatpush1.msra.mxu0 0.0
    %170 = vmatprep.subr.mxu0 0.0
    %171 = vmatpush1.msra.mxu0 0.0
    %172 = vmatprep.subr.mxu0 0.0
    %173 = vmatpush1.msra.mxu0 0.0
    %174 = vmatprep.mubr.f32.mxu0 0.0
    %175 = vmatmul.mubr.f32.gmra.mrb[0].mxu0 %v108
    %v176 = vpop.f32.mrb[0].mxu0
    %v177 = vadd.f32 %v104, %v176
    %v178 = vpop.f32.mrb[0].mxu0
    %179 = vdwg.mxu0
    %v180 = vld [vmem:[#allocation9] sm:$0xff]
    %v181 = vld [vmem:[#allocation9 + $0x8] sm:$0xff]
    %v182 = vld [vmem:[#allocation9 + $0x10] sm:$0xff]
    %v183 = vld [vmem:[%s6] sm:$0x1]
    %v185 = vlaneseq
    %v186 = vshrl.u32 %v185, 7
    %v187 = vsub.s32 0, %v186
    %v188 = vrot.slane %v183, %v187
    %vm190 = vcmask 195584
    %v192 = vsel %vm190, %v93, 0
    %v195 = vsel %vm190, %v94, 0
    %197 = vmatprep.subr.mxu0 0.0
    %198 = vmatpush1.msra.mxu0 %v180
    %199 = vmatprep.subr.mxu0 0.0
    %200 = vmatpush1.msra.mxu0 %v181
    %201 = vmatprep.subr.mxu0 0.0
    %202 = vmatpush1.msra.mxu0 %v182
    %203 = vmatprep.subr.mxu0 0.0
    %204 = vmatpush1.msra.mxu0 0.0
    %205 = vmatprep.subr.mxu0 0.0
    %206 = vmatpush1.msra.mxu0 0.0
    %207 = vmatprep.subr.mxu0 0.0
    %208 = vmatpush1.msra.mxu0 0.0
    %209 = vmatprep.subr.mxu0 0.0
    %210 = vmatpush1.msra.mxu0 0.0
    %211 = vmatprep.subr.mxu0 0.0
    %212 = vmatpush1.msra.mxu0 0.0
    %213 = vmatprep.subr.mxu0 0.0
    %214 = vmatpush1.msra.mxu0 0.0
    %215 = vmatprep.subr.mxu0 0.0
    %216 = vmatpush1.msra.mxu0 0.0
    %217 = vmatprep.subr.mxu0 0.0
    %218 = vmatpush1.msra.mxu0 0.0
    %219 = vmatprep.subr.mxu0 0.0
    %220 = vmatpush1.msra.mxu0 0.0
    %221 = vmatprep.subr.mxu0 0.0
    %222 = vmatpush1.msra.mxu0 0.0
    %223 = vmatprep.subr.mxu0 0.0
    %224 = vmatpush1.msra.mxu0 0.0
    %225 = vmatprep.subr.mxu0 0.0
    %226 = vmatpush1.msra.mxu0 0.0
    %227 = vmatprep.subr.mxu0 0.0
    %228 = vmatpush1.msra.mxu0 0.0
    %229 = vmatprep.subr.mxu0 0.0
    %230 = vmatpush1.msra.mxu0 0.0
    %231 = vmatprep.subr.mxu0 0.0
    %232 = vmatpush1.msra.mxu0 0.0
    %233 = vmatprep.subr.mxu0 0.0
    %234 = vmatpush1.msra.mxu0 0.0
    %235 = vmatprep.subr.mxu0 0.0
    %236 = vmatpush1.msra.mxu0 0.0
    %237 = vmatprep.subr.mxu0 0.0
    %238 = vmatpush1.msra.mxu0 0.0
    %239 = vmatprep.subr.mxu0 0.0
    %240 = vmatpush1.msra.mxu0 0.0
    %241 = vmatprep.subr.mxu0 0.0
    %242 = vmatpush1.msra.mxu0 0.0
    %243 = vmatprep.subr.mxu0 0.0
    %244 = vmatpush1.msra.mxu0 0.0
    %245 = vmatprep.subr.mxu0 0.0
    %246 = vmatpush1.msra.mxu0 0.0
    %247 = vmatprep.subr.mxu0 0.0
    %248 = vmatpush1.msra.mxu0 0.0
    %249 = vmatprep.subr.mxu0 0.0
    %250 = vmatpush1.msra.mxu0 0.0
    %251 = vmatprep.subr.mxu0 0.0
    %252 = vmatpush1.msra.mxu0 0.0
    %253 = vmatprep.subr.mxu0 0.0
    %254 = vmatpush1.msra.mxu0 0.0
    %255 = vmatprep.subr.mxu0 0.0
    %256 = vmatpush1.msra.mxu0 0.0
    %257 = vmatprep.subr.mxu0 0.0
    %258 = vmatpush1.msra.mxu0 0.0
    %259 = vmatprep.subr.mxu0 0.0
    %260 = vmatpush1.msra.mxu0 0.0
    %261 = vmatprep.mubr.f32.mxu0 0.0
    %262 = vmatmul.mubr.f32.gmra.mrb[0].mxu0 %v192
    %v263 = vpop.f32.mrb[0].mxu0
    %v264 = vadd.f32 %v188, %v263
    %v265 = vpop.f32.mrb[0].mxu0
    %266 = vmatprep.mubr.f32.mxu0 0.0
    %267 = vmatmul.mubr.f32.gmra.mrb[0].mxu0 %v195
    %v268 = vpop.f32.mrb[0].mxu0
    %v269 = vadd.f32 %v188, %v268
    %v270 = vpop.f32.mrb[0].mxu0
    %271 = vdwg.mxu0
    %v274 = vunpack.c.l.s4 1966171168
    %v275 = vunpack.c.0.s8 %v274
    %v276 = vlaneseq
    %v277 = vshrl.u32 %v276, 7
    %v278 = vsub.s32 %v275, %v277
    %v279 = vrot.slane %v177, %v278
    %v280 = vcombine.high %v279, %v279
    %v282 = vunpack.c.l.s4 1966171168
    %v283 = vunpack.c.0.s8 %v282
    %v284 = vlaneseq
    %v285 = vshrl.u32 %v284, 7
    %v286 = vsub.s32 %v283, %v285
    %v287 = vrot.slane %v279, %v286
    %v289 = vunpack.c.l.s4 1966171168
    %v290 = vunpack.c.0.s8 %v289
    %v291 = vlaneseq
    %v292 = vshrl.u32 %v291, 7
    %v293 = vsub.s32 %v290, %v292
    %v294 = vrot.slane %v280, %v293
    %v295 = vlaneseq
    %v296 = vshrl.u32 %v295, 7
    %v297 = vsub.s32 0, %v296
    %v298 = vrot.slane %v287, %v297
    %v299 = vlaneseq
    %v300 = vshrl.u32 %v299, 7
    %v301 = vsub.s32 0, %v300
    %v302 = vrot.slane %v294, %v301
    %v305 = vadd.f32 %v264, %v298
    %v306 = vadd.f32 %v269, %v302
    %v307 = vtanh.pop %v305
    %v308 = vtanh.pop %v306
    %v309 = vld [vmem:[%s7] sm:$0x1]
    %v311 = vlaneseq
    %v312 = vshrl.u32 %v311, 7
    %v313 = vsub.s32 0, %v312
    %v314 = vrot.slane %v309, %v313
    %v316 = vmul.f32 %v307, %v314
    %v317 = vmul.f32 %v308, %v314
    %vm318 = vcmask 261120
    %v319 = vsel %vm318, %v316, 0.0
    %320 = vadd.xlane.f32.xlu0 %v319
    %v321 = vpop.xlane.xlu0 %320
    %v322 = vsel %vm318, %v317, 0.0
    %323 = vadd.xlane.f32.xlu0 %v322
    %v324 = vpop.xlane.xlu0 %323
    %s325 = sld [smem:[#allocation2]]
    %v326 = vstv %s325
    %v327 = vadd.f32 %v321, %v326
    %v328 = vadd.f32 %v324, %v326
    %v331 = vlaneseq
    %v332 = vand.u32 %v331, 127
    %v333 = vlaneseq
    %v334 = vshrl.u32 %v333, 7
    %v335 = vsub.s32 %v332, %v334
    %v336 = vrot.slane %v327, %v335
    %v337 = vlaneseq
    %v338 = vshrl.u32 %v337, 7
    %v339 = vsub.s32 %v332, %v338
    %v340 = vrot.slane %v328, %v339
    %vm341 = vcmask 1041409
    %v342 = vsel %vm341, %v340, %v336
    %vm344 = vcmask 58368
    %v345 = vsel %vm344, %v342, -inf
    %346 = vmax.xlane.f32.xlu0 %v345
    %v347 = vpop.xlane.xlu0 %346
    %v349 = vlaneseq
    %v350 = vshrl.u32 %v349, 7
    %v351 = vsub.s32 0, %v350
    %v352 = vrot.slane %v347, %v351
    %v353 = vlaneseq
    %v354 = vshrl.u32 %v353, 7
    %v355 = vsub.s32 1, %v354
    %v356 = vrot.slane %v347, %v355
    %v359 = vsub.f32 %v327, %v352
    %v360 = vsub.f32 %v328, %v356
    %v361 = vmul.f32 %v359, 1.442695
    %v362 = vpow.pop %v361
    %v363 = vmul.f32 %v360, 1.442695
    %v364 = vpow.pop %v363
    %367 = vset.pattern.permute.xlu0 0
    %368 = vperm.xlu0 %367, %v362
    %v369 = vpop.permute.xlu0 %368
    %370 = vset.pattern.permute.xlu0 0
    %371 = vperm.xlu0 %370, %v364
    %v372 = vpop.permute.xlu0 %371
    %v373 = vlaneseq
    %v374 = vshrl.u32 %v373, 7
    %v375 = vsub.s32 %v332, %v374
    %v376 = vrot.slane %v369, %v375
    %v377 = vlaneseq
    %v378 = vshrl.u32 %v377, 7
    %v379 = vsub.s32 %v332, %v378
    %v380 = vrot.slane %v372, %v379
    %v381 = vsel %vm341, %v380, %v376
    %v383 = vsel %vm344, %v381, 0.0
    %384 = vadd.xlane.f32.xlu0 %v383
    %v385 = vpop.xlane.xlu0 %384
    %v386 = vrcp.pop %v385
    %v388 = vlaneseq
    %v389 = vshrl.u32 %v388, 7
    %v390 = vsub.s32 0, %v389
    %v391 = vrot.slane %v386, %v390
    %v392 = vlaneseq
    %v393 = vshrl.u32 %v392, 7
    %v394 = vsub.s32 1, %v393
    %v395 = vrot.slane %v386, %v394
    %v398 = vmul.f32 %v362, %v391
    %v399 = vmul.f32 %v364, %v395
    %401 = vset.pattern.permute.xlu0 0
    %402 = vperm.xlu0 %401, %v398
    %v403 = vpop.permute.xlu0 %402
    %v404 = vlaneseq
    %v405 = vshrl.u32 %v404, 7
    %v406 = vsub.s32 %v332, %v405
    %v407 = vrot.slane %v403, %v406
    %vm408 = vcmask 64512
    %v409 = vsel %vm408, %v407, 0
    %411 = vmatprep.subr.mxu0 0.0
    %412 = vmatpush1.msra.mxu0 %v95
    %413 = vmatprep.subr.mxu0 0.0
    %414 = vmatpush1.msra.mxu0 0.0
    %415 = vmatprep.subr.mxu0 0.0
    %416 = vmatpush1.msra.mxu0 0.0
    %417 = vmatprep.subr.mxu0 0.0
    %418 = vmatpush1.msra.mxu0 0.0
    %419 = vmatprep.subr.mxu0 0.0
    %420 = vmatpush1.msra.mxu0 0.0
    %421 = vmatprep.subr.mxu0 0.0
    %422 = vmatpush1.msra.mxu0 0.0
    %423 = vmatprep.subr.mxu0 0.0
    %424 = vmatpush1.msra.mxu0 0.0
    %425 = vmatprep.subr.mxu0 0.0
    %426 = vmatpush1.msra.mxu0 0.0
    %427 = vmatprep.subr.mxu0 0.0
    %428 = vmatpush1.msra.mxu0 0.0
    %429 = vmatprep.subr.mxu0 0.0
    %430 = vmatpush1.msra.mxu0 0.0
    %431 = vmatprep.subr.mxu0 0.0
    %432 = vmatpush1.msra.mxu0 0.0
    %433 = vmatprep.subr.mxu0 0.0
    %434 = vmatpush1.msra.mxu0 0.0
    %435 = vmatprep.subr.mxu0 0.0
    %436 = vmatpush1.msra.mxu0 0.0
    %437 = vmatprep.subr.mxu0 0.0
    %438 = vmatpush1.msra.mxu0 0.0
    %439 = vmatprep.subr.mxu0 0.0
    %440 = vmatpush1.msra.mxu0 0.0
    %441 = vmatprep.subr.mxu0 0.0
    %442 = vmatpush1.msra.mxu0 0.0
    %443 = vmatprep.subr.mxu0 0.0
    %444 = vmatpush1.msra.mxu0 0.0
    %445 = vmatprep.subr.mxu0 0.0
    %446 = vmatpush1.msra.mxu0 0.0
    %447 = vmatprep.subr.mxu0 0.0
    %448 = vmatpush1.msra.mxu0 0.0
    %449 = vmatprep.subr.mxu0 0.0
    %450 = vmatpush1.msra.mxu0 0.0
    %451 = vmatprep.subr.mxu0 0.0
    %452 = vmatpush1.msra.mxu0 0.0
    %453 = vmatprep.subr.mxu0 0.0
    %454 = vmatpush1.msra.mxu0 0.0
    %455 = vmatprep.subr.mxu0 0.0
    %456 = vmatpush1.msra.mxu0 0.0
    %457 = vmatprep.subr.mxu0 0.0
    %458 = vmatpush1.msra.mxu0 0.0
    %459 = vmatprep.subr.mxu0 0.0
    %460 = vmatpush1.msra.mxu0 0.0
    %461 = vmatprep.subr.mxu0 0.0
    %462 = vmatpush1.msra.mxu0 0.0
    %463 = vmatprep.subr.mxu0 0.0
    %464 = vmatpush1.msra.mxu0 0.0
    %465 = vmatprep.subr.mxu0 0.0
    %466 = vmatpush1.msra.mxu0 0.0
    %467 = vmatprep.subr.mxu0 0.0
    %468 = vmatpush1.msra.mxu0 0.0
    %469 = vmatprep.subr.mxu0 0.0
    %470 = vmatpush1.msra.mxu0 0.0
    %471 = vmatprep.subr.mxu0 0.0
    %472 = vmatpush1.msra.mxu0 0.0
    %473 = vmatprep.subr.mxu0 0.0
    %474 = vmatpush1.msra.mxu0 0.0
    %475 = vmatprep.mubr.f32.mxu0 0.0
    %476 = vmatmul.mubr.f32.gmra.mrb[0].mxu0 %v409
    %v477 = vpop.f32.mrb[0].mxu0
    %v478 = vadd.f32 0.0, %v477
    %v479 = vpop.f32.mrb[0].mxu0
    %480 = vdwg.mxu0
    %482 = vset.pattern.permute.xlu0 0
    %483 = vperm.xlu0 %482, %v399
    %v484 = vpop.permute.xlu0 %483
    %v485 = vlaneseq
    %v486 = vshrl.u32 %v485, 7
    %v487 = vsub.s32 %v332, %v486
    %v488 = vrot.slane %v484, %v487
    %v489 = vsel %vm408, %v488, 0
    %491 = vmatprep.subr.mxu0 0.0
    %492 = vmatpush1.msra.mxu0 %v96
    %493 = vmatprep.subr.mxu0 0.0
    %494 = vmatpush1.msra.mxu0 0.0
    %495 = vmatprep.subr.mxu0 0.0
    %496 = vmatpush1.msra.mxu0 0.0
    %497 = vmatprep.subr.mxu0 0.0
    %498 = vmatpush1.msra.mxu0 0.0
    %499 = vmatprep.subr.mxu0 0.0
    %500 = vmatpush1.msra.mxu0 0.0
    %501 = vmatprep.subr.mxu0 0.0
    %502 = vmatpush1.msra.mxu0 0.0
    %503 = vmatprep.subr.mxu0 0.0
    %504 = vmatpush1.msra.mxu0 0.0
    %505 = vmatprep.subr.mxu0 0.0
    %506 = vmatpush1.msra.mxu0 0.0
    %507 = vmatprep.subr.mxu0 0.0
    %508 = vmatpush1.msra.mxu0 0.0
    %509 = vmatprep.subr.mxu0 0.0
    %510 = vmatpush1.msra.mxu0 0.0
    %511 = vmatprep.subr.mxu0 0.0
    %512 = vmatpush1.msra.mxu0 0.0
    %513 = vmatprep.subr.mxu0 0.0
    %514 = vmatpush1.msra.mxu0 0.0
    %515 = vmatprep.subr.mxu0 0.0
    %516 = vmatpush1.msra.mxu0 0.0
    %517 = vmatprep.subr.mxu0 0.0
    %518 = vmatpush1.msra.mxu0 0.0
    %519 = vmatprep.subr.mxu0 0.0
    %520 = vmatpush1.msra.mxu0 0.0
    %521 = vmatprep.subr.mxu0 0.0
    %522 = vmatpush1.msra.mxu0 0.0
    %523 = vmatprep.subr.mxu0 0.0
    %524 = vmatpush1.msra.mxu0 0.0
    %525 = vmatprep.subr.mxu0 0.0
    %526 = vmatpush1.msra.mxu0 0.0
    %527 = vmatprep.subr.mxu0 0.0
    %528 = vmatpush1.msra.mxu0 0.0
    %529 = vmatprep.subr.mxu0 0.0
    %530 = vmatpush1.msra.mxu0 0.0
    %531 = vmatprep.subr.mxu0 0.0
    %532 = vmatpush1.msra.mxu0 0.0
    %533 = vmatprep.subr.mxu0 0.0
    %534 = vmatpush1.msra.mxu0 0.0
    %535 = vmatprep.subr.mxu0 0.0
    %536 = vmatpush1.msra.mxu0 0.0
    %537 = vmatprep.subr.mxu0 0.0
    %538 = vmatpush1.msra.mxu0 0.0
    %539 = vmatprep.subr.mxu0 0.0
    %540 = vmatpush1.msra.mxu0 0.0
    %541 = vmatprep.subr.mxu0 0.0
    %542 = vmatpush1.msra.mxu0 0.0
    %543 = vmatprep.subr.mxu0 0.0
    %544 = vmatpush1.msra.mxu0 0.0
    %545 = vmatprep.subr.mxu0 0.0
    %546 = vmatpush1.msra.mxu0 0.0
    %547 = vmatprep.subr.mxu0 0.0
    %548 = vmatpush1.msra.mxu0 0.0
    %549 = vmatprep.subr.mxu0 0.0
    %550 = vmatpush1.msra.mxu0 0.0
    %551 = vmatprep.subr.mxu0 0.0
    %552 = vmatpush1.msra.mxu0 0.0
    %553 = vmatprep.subr.mxu0 0.0
    %554 = vmatpush1.msra.mxu0 0.0
    %555 = vmatprep.mubr.f32.mxu0 0.0
    %556 = vmatmul.mubr.f32.gmra.mrb[0].mxu0 %v489
    %v557 = vpop.f32.mrb[0].mxu0
    %v558 = vadd.f32 0.0, %v557
    %v559 = vpop.f32.mrb[0].mxu0
    %560 = vdwg.mxu0
    %v563 = vrot.slane %v558, 7
    %v564 = vsel %vm341, %v563, %v478
    %vm566 = vcmask 254976
    %567 = vst.msk [vmem:[#allocation11] sm:$0x3] %vm566, %v564
    %v568 = vsel %vm341, %v488, %v407
    %570 = vst.msk [vmem:[#allocation12] sm:$0x3] %vm344, %v568
    // Predicated region
    $region54: #{tpu_custom_call.1} parent=1 // pred_check
      _
    $region55: #{tpu_custom_call.1} parent=1 // pred_check_branch
      %572 = sbr.rel (0) target = $region57
    $region56: #{tpu_custom_call.1} parent=1 // pred_region
      %s574 = ssub.s32 32, 32
      %575 = vsyncadd [#allocation5], %s574
      %s577 = sshll.u32 [#allocation11], 4
      %s578 = int_to_ptr.vmem [resolvable:$true] %s577
      %580 = dma.vmem_to_hbm [thread:$0]  %s578, 32, %s9, [#allocation5]
    $region57: #{tpu_custom_call.1} parent=1 // pred_fallthru
      _
    // Predicated region
    $region58: #{tpu_custom_call.1} parent=1 // pred_check
      _
    $region59: #{tpu_custom_call.1} parent=1 // pred_check_branch
      %582 = sbr.rel (0) target = $region61
    $region60: #{tpu_custom_call.1} parent=1 // pred_region
      %s584 = ssub.s32 32, 32
      %585 = vsyncadd [#allocation13], %s584
      %s587 = sshll.u32 [#allocation12], 4
      %s588 = int_to_ptr.vmem [resolvable:$true] %s587
      %590 = dma.vmem_to_hbm [thread:$0]  %s588, 32, %s10, [#allocation13]
    $region61: #{tpu_custom_call.1} parent=1 // pred_fallthru
      _
    // Predicated region
    $region62: #{tpu_custom_call.1} parent=1 // pred_check
      _
    $region63: #{tpu_custom_call.1} parent=1 // pred_check_branch
      %592 = sbr.rel (0) target = $region65
    $region64: #{tpu_custom_call.1} parent=1 // pred_region
      %593 = dma.done [#allocation5], 32
    $region65: #{tpu_custom_call.1} parent=1 // pred_fallthru
      _
    // Predicated region
    $region66: #{tpu_custom_call.1} parent=1 // pred_check
      _
    $region67: #{tpu_custom_call.1} parent=1 // pred_check_branch
      %595 = sbr.rel (0) target = $region69
    $region68: #{tpu_custom_call.1} parent=1 // pred_region
      %596 = dma.done [#allocation13], 32
    $region69: #{tpu_custom_call.1} parent=1 // pred_fallthru
      _
    %597 = vsyncpa [#allocation4], 1
    %598 = vsyncpa [#allocation7], 1
    %599 = vsyncpa [#allocation10], 1
    %600 = vsyncpa [#allocation5], 1
    %601 = vsyncpa [#allocation13], 1

</llo_original>
